<compile_context>
chip_gen: v7x
topology: tpu7x:2x2x1
jax: 0.10.0
libtpu: 0.0.40
codegen_flags: <defaults>
</compile_context>

<pallas_src>
import functools
import math

import jax
import jax.numpy as jnp
from jax import lax
from jax.experimental import pallas as pl
from jax.experimental.pallas import tpu as pltpu


def _round_up(v, m):
    return (v + m - 1) // m * m


def _pick_tile(limit, padded):
    """Largest multiple of 128 that divides `padded` and is <= max(limit, 128)."""
    t = max(min(limit, padded) // 128 * 128, 128)
    while padded % t:
        t -= 128
    return t


def _linear_kernel_multi_k(x_ref, w_ref, b_ref, o_ref, acc_ref):
    """One (M, tn) output tile, accumulated over the K grid axis (last, arbitrary)."""
    k = pl.program_id(1)

    @pl.when(k == 0)
    def _():
        acc_ref[...] = jnp.zeros_like(acc_ref)

    # x tile (M, tk) contracted against native-layout weight tile (tn, tk):
    # contract last dim of both => x @ W^T without any wrapper-side transpose.
    acc_ref[...] += lax.dot_general(
        x_ref[...],
        w_ref[...],
        dimension_numbers=(((1,), (1,)), ((), ())),
        preferred_element_type=jnp.float32,
    )

    @pl.when(k == pl.num_programs(1) - 1)
    def _():
        # bias tile is (1, tn); broadcasts over the M rows.
        o_ref[...] = (acc_ref[...] + b_ref[...]).astype(o_ref.dtype)


def _linear_kernel_single_k(x_ref, w_ref, b_ref, o_ref):
    """Fast path: whole K fits in one tile -> no accumulator round-trip."""
    o_ref[...] = (
        lax.dot_general(
            x_ref[...],
            w_ref[...],
            dimension_numbers=(((1,), (1,)), ((), ())),
            preferred_element_type=jnp.float32,
        )
        + b_ref[...]
    ).astype(o_ref.dtype)


@functools.partial(jax.jit, static_argnames=("tn", "tk"))
def segment_consensus_forward(x, weight, bias, *, tn=256, tk=2048):
    """y = x @ weight.T + bias via a Pallas weight-streaming matmul kernel.

    x:      (..., in_features)            -- batch*segments rows assumed modest
    weight: (out_features, in_features)   -- native PyTorch nn.Linear layout
    bias:   (out_features,)
    """
    *lead, K = x.shape
    N = weight.shape[0]
    M = math.prod(lead) if lead else 1

    # Pad to TPU-friendly multiples; zero padding does not change x @ W^T + b.
    Mp = _round_up(max(M, 1), 8)
    Kp = _round_up(K, 128)
    Np = _round_up(N, 128)

    itemsize = jnp.dtype(x.dtype).itemsize

    # Effective tile sizes: clamp to the padded problem, must divide it.
    tn_eff = _pick_tile(tn, Np)
    # Give the parallel j-axis >=2 steps when possible (dual TensorCores on v7x,
    # and double-buffered pipelining of the weight stream everywhere).
    if Np // tn_eff < 2 and Np > 128:
        tn_eff = _pick_tile(Np // 2, Np)

    tk_eff = _pick_tile(tk, Kp)

    def _vmem_bytes(tn_e, tk_e):
        # double-buffered x / W / bias / out tiles + f32 accumulator scratch
        return (
            2 * (Mp * tk_e + tn_e * tk_e + tn_e + Mp * tn_e) * itemsize
            + Mp * tn_e * 4
        )

    # Keep the working set well under the scoped-VMEM ceiling (64 MiB on v7x).
    VMEM_BUDGET = 20 * 1024 * 1024
    while tk_eff > 128 and _vmem_bytes(tn_eff, tk_eff) > VMEM_BUDGET:
        tk_eff = _pick_tile(tk_eff - 128, Kp)

    n_steps = Np // tn_eff
    k_steps = Kp // tk_eff

    x2d = x.reshape(M, K)
    if (Mp, Kp) != (M, K):
        x2d = jnp.pad(x2d, ((0, Mp - M), (0, Kp - K)))
    w = weight  # keep native (N, K) layout -> no transpose / extra HBM pass
    if (Np, Kp) != (N, K):
        w = jnp.pad(w, ((0, Np - N), (0, Kp - K)))
    b2d = bias.reshape(1, N)
    if Np != N:
        b2d = jnp.pad(b2d, ((0, 0), (0, Np - N)))

    cost = pl.CostEstimate(
        flops=2 * M * N * K,
        bytes_accessed=(M * K + N * K + M * N + N) * itemsize,
        transcendentals=0,
    )
    vmem_limit = int(
        min(max(2 * _vmem_bytes(tn_eff, tk_eff), 16 * 1024 * 1024), 48 * 1024 * 1024)
    )

    if k_steps == 1:
        out2d = pl.pallas_call(
            _linear_kernel_single_k,
            out_shape=jax.ShapeDtypeStruct((Mp, Np), x.dtype),
            grid_spec=pltpu.PrefetchScalarGridSpec(
                num_scalar_prefetch=0,
                grid=(n_steps,),
                in_specs=[
                    pl.BlockSpec((Mp, tk_eff), lambda j: (0, 0)),      # x (resident)
                    pl.BlockSpec((tn_eff, tk_eff), lambda j: (j, 0)),  # W (N,K) tile
                    pl.BlockSpec((1, tn_eff), lambda j: (0, j)),       # bias tile
                ],
                out_specs=pl.BlockSpec((Mp, tn_eff), lambda j: (0, j)),
            ),
            compiler_params=pltpu.CompilerParams(
                dimension_semantics=("parallel",),
                vmem_limit_bytes=vmem_limit,
            ),
            cost_estimate=cost,
        )(x2d, w, b2d)
    else:
        out2d = pl.pallas_call(
            _linear_kernel_multi_k,
            out_shape=jax.ShapeDtypeStruct((Mp, Np), x.dtype),
            grid_spec=pltpu.PrefetchScalarGridSpec(
                num_scalar_prefetch=0,
                grid=(n_steps, k_steps),
                in_specs=[
                    pl.BlockSpec((Mp, tk_eff), lambda j, k: (0, k)),      # x K-slab
                    pl.BlockSpec((tn_eff, tk_eff), lambda j, k: (j, k)),  # W (N,K) tile
                    pl.BlockSpec((1, tn_eff), lambda j, k: (0, j)),       # bias tile
                ],
                out_specs=pl.BlockSpec((Mp, tn_eff), lambda j, k: (0, j)),
                scratch_shapes=[pltpu.VMEM((Mp, tn_eff), jnp.float32)],
            ),
            compiler_params=pltpu.CompilerParams(
                dimension_semantics=("parallel", "arbitrary"),
                vmem_limit_bytes=vmem_limit,
            ),
            cost_estimate=cost,
        )(x2d, w, b2d)

    return out2d[:M, :N].reshape(*lead, N)


def init_segment_consensus_params(key, in_features, out_features, dtype=jnp.float32):
    """Deterministic init mimicking torch.nn.Linear default (U(-1/sqrt(in), 1/sqrt(in)))."""
    kw, kb = jax.random.split(key)
    bound = 1.0 / (in_features ** 0.5)
    weight = jax.random.uniform(
        kw, (out_features, in_features), dtype=dtype, minval=-bound, maxval=bound
    )
    bias = jax.random.uniform(
        kb, (out_features,), dtype=dtype, minval=-bound, maxval=bound
    )
    return weight, bias


if __name__ == "__main__":
    key = jax.random.PRNGKey(0)
    k_x, k_p, k_x2, k_p2, k_x3, k_p3 = jax.random.split(key, 6)

    # Case 1: small shapes (batch=2, segments=8, in=256, out=128) -> single-K fast path.
    batch, segments, in_features, out_features = 2, 8, 256, 128
    x = jax.random.normal(k_x, (batch, segments, in_features), dtype=jnp.float32)
    weight, bias = init_segment_consensus_params(k_p, in_features, out_features)
    y = jax.block_until_ready(segment_consensus_forward(x, weight, bias))
    y_ref = x @ weight.T + bias
    assert y.shape == (batch, segments, out_features)
    assert jnp.allclose(y, y_ref, atol=1e-4, rtol=1e-4), "mismatch vs reference (case 1)"

    # Case 2: odd shapes exercising padding + the multi-K accumulation path.
    b2, s2, inf2, outf2 = 3, 5, 512, 320
    x2 = jax.random.normal(k_x2, (b2, s2, inf2), dtype=jnp.float32)
    w2, bb2 = init_segment_consensus_params(k_p2, inf2, outf2)
    y2 = jax.block_until_ready(segment_consensus_forward(x2, w2, bb2, tk=256))
    y2_ref = x2 @ w2.T + bb2
    assert y2.shape == (b2, s2, outf2)
    assert jnp.allclose(y2, y2_ref, atol=1e-4, rtol=1e-4), "mismatch vs reference (case 2)"

    # Case 3: the module's default dims (in=2048, out=256) with a small batch.
    b3, s3, inf3, outf3 = 2, 4, 2048, 256
    x3 = jax.random.normal(k_x3, (b3, s3, inf3), dtype=jnp.float32)
    w3, bb3 = init_segment_consensus_params(k_p3, inf3, outf3)
    y3 = jax.block_until_ready(segment_consensus_forward(x3, w3, bb3))
    y3_ref = x3 @ w3.T + bb3
    assert y3.shape == (b3, s3, outf3)
    assert jnp.allclose(y3, y3_ref, atol=1e-3, rtol=1e-4), "mismatch vs reference (case 3)"

    print("KERNEL_OK")
</pallas_src>

<mosaic_0001>
module attributes {stable_mosaic.version = 11 : i64} {
  func.func @_linear_kernel_single_k(%arg0: i32, %arg1: memref<16x256xf32, #tpu.memory_space<vmem>>, %arg2: memref<128x256xf32, #tpu.memory_space<vmem>>, %arg3: memref<1x128xf32, #tpu.memory_space<vmem>>, %arg4: memref<16x128xf32, #tpu.memory_space<vmem>>) attributes {dimension_semantics = [#tpu.dimension_semantics<parallel>], iteration_bounds = array<i64: 1>, scalar_prefetch = 0 : i64, scratch_operands = 0 : i64, tpu.core_type = #tpu.core_type<tc>, window_params = [{pipeline_mode = #tpu.pipeline_mode<synchronous>, transform_indices = @transform_0, window_bounds = array<i64: 16, 256>}, {transform_indices = @transform_1, window_bounds = array<i64: 128, 256>}, {transform_indices = @transform_2, window_bounds = array<i64: 1, 128>}, {transform_indices = @transform_3, window_bounds = array<i64: 16, 128>}]} {
    %c0 = arith.constant 0 : index
    %c0_0 = arith.constant 0 : index
    %0 = vector.load %arg1[%c0, %c0_0] : memref<16x256xf32, #tpu.memory_space<vmem>>, vector<16x256xf32>
    %c0_1 = arith.constant 0 : index
    %c0_2 = arith.constant 0 : index
    %1 = vector.load %arg2[%c0_1, %c0_2] : memref<128x256xf32, #tpu.memory_space<vmem>>, vector<128x256xf32>
    %cst = arith.constant dense<0.000000e+00> : vector<16x128xf32>
    %2 = tpu.matmul %0, %1, %cst {dimension_numbers = #tpu.dot_dimension_numbers<[1], [1], [0], [0], [0, 0, 1, 0], [], []>} : vector<16x256xf32>, vector<128x256xf32>, vector<16x128xf32> -> vector<16x128xf32>
    %c0_3 = arith.constant 0 : index
    %c0_4 = arith.constant 0 : index
    %3 = vector.load %arg3[%c0_3, %c0_4] : memref<1x128xf32, #tpu.memory_space<vmem>>, vector<1x128xf32>
    %4 = vector.broadcast %3 : vector<1x128xf32> to vector<16x128xf32>
    %5 = arith.addf %2, %4 : vector<16x128xf32>
    %c0_5 = arith.constant 0 : index
    %c0_6 = arith.constant 0 : index
    %6 = vector.load %arg4[%c0_5, %c0_6] : memref<16x128xf32, #tpu.memory_space<vmem>>, vector<16x128xf32>
    tpu.vector_store %arg4[%c0_5, %c0_6], %5 {strides = array<i32>} : memref<16x128xf32, #tpu.memory_space<vmem>>, vector<16x128xf32>,
    return
  }
  func.func @transform_0(%arg0: i32) -> (i32, i32) {
    %c0_i32 = arith.constant 0 : i32
    %c0_i32_0 = arith.constant 0 : i32
    %c0_i32_1 = arith.constant 0 : i32
    return %c0_i32, %c0_i32_0 : i32, i32
  }
  func.func @transform_1(%arg0: i32) -> (i32, i32) {
    %c0_i32 = arith.constant 0 : i32
    %c0_i32_0 = arith.constant 0 : i32
    return %arg0, %c0_i32 : i32, i32
  }
  func.func @transform_2(%arg0: i32) -> (i32, i32) {
    %c0_i32 = arith.constant 0 : i32
    %c0_i32_0 = arith.constant 0 : i32
    return %c0_i32, %arg0 : i32, i32
  }
  func.func @transform_3(%arg0: i32) -> (i32, i32) {
    %c0_i32 = arith.constant 0 : i32
    %c0_i32_0 = arith.constant 0 : i32
    return %c0_i32, %arg0 : i32, i32
  }
}

</mosaic_0001>

<llo_original>
// kernel: segment_consensus_forward.1
$region0: #{segment_consensus_forward.1}
  #allocation0 [shape = 'u32[]', space=smem, size = 0x4, offset = 0x4, fixed_abs, tag = 'smem constant byte address 0x4 - core index']
  #allocation1 [shape = 'u32[144,128]{1,0:T(1,128)}', space=vmem, size = 0x12000, scoped, tag = 'internal scratch']
  %s0 = inlined_call_operand.hbm [shape: f32[16,256], index: 0, kind: input, shape index: {}]
  %s1 = inlined_call_operand.hbm [shape: f32[128,256], index: 1, kind: input, shape index: {}]
  %s2 = inlined_call_operand.vmem [shape: f32[1,128], index: 2, kind: input, shape index: {}]
  %s3 = inlined_call_operand.hbm [shape: f32[16,128], index: 3, kind: output, shape index: {}]
  %s4 = sld [smem:[#allocation0]]
  $region30: #{segment_consensus_forward.1} parent=0
    _
  %s6 = ssub.s32 1, %s4
  %s7 = scalar_select 0, %s6, %s4
  $region1: #{segment_consensus_forward.1} parent=0
    #allocation2 [shape = 'u8[16384]{0}', space=vmem, size = 0x4000, scoped, tag = 'input window, operand 0, single buffered']
    #allocation3 [shape = 's32[1]{0}', space=sflag, size = 0x4, scoped, tag = 'scoped memory for segment_consensus_forward.1']
    #allocation4 [shape = 's32[1]{0}', space=sflag, size = 0x4, scoped, tag = 'scoped memory for segment_consensus_forward.1']
    #allocation5 [shape = 'u8[131072]{0}', space=vmem, size = 0x20000, scoped, tag = 'input window, operand 1, single buffered']
    #allocation6 [shape = 's32[1]{0}', space=sflag, size = 0x4, scoped, tag = 'scoped memory for segment_consensus_forward.1']
    #allocation7 [shape = 'u8[8192]{0}', space=vmem, size = 0x2000, scoped, tag = 'output window, operand 0, single buffered']
    %8 = vsyncpa [#allocation3], 0
    %9 = vsyncpa [#allocation6], 0
    %10 = vsyncpa [#allocation4], 0
    // Predicated region
    $region2: #{segment_consensus_forward.1} parent=1 // pred_check
      _
    $region3: #{segment_consensus_forward.1} parent=1 // pred_check_branch
      %12 = sbr.rel (0) target = $region5
    $region4: #{segment_consensus_forward.1} parent=1 // pred_region
      %s14 = ssub.s32 512, 512
      %15 = vsyncadd [#allocation3], %s14
      %s16 = sshll.u32 [#allocation2], 4
      %s17 = int_to_ptr.vmem [resolvable:$true] %s16
      %22 = dma.hbm_to_vmem [thread:$0]  %s0, 512, %s17, [#allocation3], 256, 256, 16
    $region5: #{segment_consensus_forward.1} parent=1 // pred_fallthru
      _
    // Predicated region
    $region6: #{segment_consensus_forward.1} parent=1 // pred_check
      _
    $region7: #{segment_consensus_forward.1} parent=1 // pred_check_branch
      %24 = sbr.rel (0) target = $region9
    $region8: #{segment_consensus_forward.1} parent=1 // pred_region
      %s26 = ssub.s32 4096, 4096
      %27 = vsyncadd [#allocation6], %s26
      %s28 = sshll.u32 [#allocation5], 4
      %s29 = int_to_ptr.vmem [resolvable:$true] %s28
      %34 = dma.hbm_to_vmem [thread:$0]  %s1, 4096, %s29, [#allocation6], 256, 256, 16
    $region9: #{segment_consensus_forward.1} parent=1 // pred_fallthru
      _
    // Predicated region
    $region10: #{segment_consensus_forward.1} parent=1 // pred_check
      _
    $region11: #{segment_consensus_forward.1} parent=1 // pred_check_branch
      %36 = sbr.rel (0) target = $region13
    $region12: #{segment_consensus_forward.1} parent=1 // pred_region
      _
    $region13: #{segment_consensus_forward.1} parent=1 // pred_fallthru
      _
    // Predicated region
    $region14: #{segment_consensus_forward.1} parent=1 // pred_check
      _
    $region15: #{segment_consensus_forward.1} parent=1 // pred_check_branch
      %38 = sbr.rel (0) target = $region17
    $region16: #{segment_consensus_forward.1} parent=1 // pred_region
      %39 = dma.done [#allocation3], 512
    $region17: #{segment_consensus_forward.1} parent=1 // pred_fallthru
      _
    // Predicated region
    $region18: #{segment_consensus_forward.1} parent=1 // pred_check
      _
    $region19: #{segment_consensus_forward.1} parent=1 // pred_check_branch
      %41 = sbr.rel (0) target = $region21
    $region20: #{segment_consensus_forward.1} parent=1 // pred_region
      %42 = dma.done [#allocation6], 4096
    $region21: #{segment_consensus_forward.1} parent=1 // pred_fallthru
      _
    %v43 = vld [vmem:[#allocation2] sm:$0xff]
    %v44 = vld [vmem:[#allocation2 + $0x8] sm:$0xff]
    %v45 = vld [vmem:[#allocation2 + $0x10] sm:$0xff]
    %v46 = vld [vmem:[#allocation2 + $0x18] sm:$0xff]
    %v47 = vld [vmem:[#allocation5] sm:$0xff]
    %v48 = vld [vmem:[#allocation5 + $0x8] sm:$0xff]
    %v49 = vld [vmem:[#allocation5 + $0x10] sm:$0xff]
    %v50 = vld [vmem:[#allocation5 + $0x18] sm:$0xff]
    %v51 = vld [vmem:[#allocation5 + $0x20] sm:$0xff]
    %v52 = vld [vmem:[#allocation5 + $0x28] sm:$0xff]
    %v53 = vld [vmem:[#allocation5 + $0x30] sm:$0xff]
    %v54 = vld [vmem:[#allocation5 + $0x38] sm:$0xff]
    %v55 = vld [vmem:[#allocation5 + $0x40] sm:$0xff]
    %v56 = vld [vmem:[#allocation5 + $0x48] sm:$0xff]
    %v57 = vld [vmem:[#allocation5 + $0x50] sm:$0xff]
    %v58 = vld [vmem:[#allocation5 + $0x58] sm:$0xff]
    %v59 = vld [vmem:[#allocation5 + $0x60] sm:$0xff]
    %v60 = vld [vmem:[#allocation5 + $0x68] sm:$0xff]
    %v61 = vld [vmem:[#allocation5 + $0x70] sm:$0xff]
    %v62 = vld [vmem:[#allocation5 + $0x78] sm:$0xff]
    %v63 = vld [vmem:[#allocation5 + $0x80] sm:$0xff]
    %v64 = vld [vmem:[#allocation5 + $0x88] sm:$0xff]
    %v65 = vld [vmem:[#allocation5 + $0x90] sm:$0xff]
    %v66 = vld [vmem:[#allocation5 + $0x98] sm:$0xff]
    %v67 = vld [vmem:[#allocation5 + $0xa0] sm:$0xff]
    %v68 = vld [vmem:[#allocation5 + $0xa8] sm:$0xff]
    %v69 = vld [vmem:[#allocation5 + $0xb0] sm:$0xff]
    %v70 = vld [vmem:[#allocation5 + $0xb8] sm:$0xff]
    %v71 = vld [vmem:[#allocation5 + $0xc0] sm:$0xff]
    %v72 = vld [vmem:[#allocation5 + $0xc8] sm:$0xff]
    %v73 = vld [vmem:[#allocation5 + $0xd0] sm:$0xff]
    %v74 = vld [vmem:[#allocation5 + $0xd8] sm:$0xff]
    %v75 = vld [vmem:[#allocation5 + $0xe0] sm:$0xff]
    %v76 = vld [vmem:[#allocation5 + $0xe8] sm:$0xff]
    %v77 = vld [vmem:[#allocation5 + $0xf0] sm:$0xff]
    %v78 = vld [vmem:[#allocation5 + $0xf8] sm:$0xff]
    %v79 = vld [vmem:[%s2] sm:$0x1]
    %v81 = vlaneseq
    %v82 = vshrl.u32 %v81, 7
    %v83 = vsub.s32 0, %v82
    %v84 = vrot.slane %v79, %v83
    %86 = vmatprep.subr.mxu0 %v48
    %87 = vmatpush1.xpose.msra.mxu0 %v47
    %88 = vmatprep.subr.mxu0 %v50
    %89 = vmatpush1.xpose.msra.mxu0 %v49
    %90 = vmatprep.subr.mxu0 %v52
    %91 = vmatpush1.xpose.msra.mxu0 %v51
    %92 = vmatprep.subr.mxu0 %v54
    %93 = vmatpush1.xpose.msra.mxu0 %v53
    %94 = vmatprep.subr.mxu0 %v56
    %95 = vmatpush1.xpose.msra.mxu0 %v55
    %96 = vmatprep.subr.mxu0 %v58
    %97 = vmatpush1.xpose.msra.mxu0 %v57
    %98 = vmatprep.subr.mxu0 %v60
    %99 = vmatpush1.xpose.msra.mxu0 %v59
    %100 = vmatprep.subr.mxu0 %v62
    %101 = vmatpush1.xpose.msra.mxu0 %v61
    %102 = vmatprep.subr.mxu0 %v64
    %103 = vmatpush1.xpose.msra.mxu0 %v63
    %104 = vmatprep.subr.mxu0 %v66
    %105 = vmatpush1.xpose.msra.mxu0 %v65
    %106 = vmatprep.subr.mxu0 %v68
    %107 = vmatpush1.xpose.msra.mxu0 %v67
    %108 = vmatprep.subr.mxu0 %v70
    %109 = vmatpush1.xpose.msra.mxu0 %v69
    %110 = vmatprep.subr.mxu0 %v72
    %111 = vmatpush1.xpose.msra.mxu0 %v71
    %112 = vmatprep.subr.mxu0 %v74
    %113 = vmatpush1.xpose.msra.mxu0 %v73
    %114 = vmatprep.subr.mxu0 %v76
    %115 = vmatpush1.xpose.msra.mxu0 %v75
    %116 = vmatprep.subr.mxu0 %v78
    %117 = vmatpush1.xpose.msra.mxu0 %v77
    %118 = vmatprep.subr.mxu0 0.0
    %119 = vmatpush1.xpose.msra.mxu0 0.0
    %120 = vmatprep.subr.mxu0 0.0
    %121 = vmatpush1.xpose.msra.mxu0 0.0
    %122 = vmatprep.subr.mxu0 0.0
    %123 = vmatpush1.xpose.msra.mxu0 0.0
    %124 = vmatprep.subr.mxu0 0.0
    %125 = vmatpush1.xpose.msra.mxu0 0.0
    %126 = vmatprep.subr.mxu0 0.0
    %127 = vmatpush1.xpose.msra.mxu0 0.0
    %128 = vmatprep.subr.mxu0 0.0
    %129 = vmatpush1.xpose.msra.mxu0 0.0
    %130 = vmatprep.subr.mxu0 0.0
    %131 = vmatpush1.xpose.msra.mxu0 0.0
    %132 = vmatprep.subr.mxu0 0.0
    %133 = vmatpush1.xpose.msra.mxu0 0.0
    %134 = vmatprep.subr.mxu0 0.0
    %135 = vmatpush1.xpose.msra.mxu0 0.0
    %136 = vmatprep.subr.mxu0 0.0
    %137 = vmatpush1.xpose.msra.mxu0 0.0
    %138 = vmatprep.subr.mxu0 0.0
    %139 = vmatpush1.xpose.msra.mxu0 0.0
    %140 = vmatprep.subr.mxu0 0.0
    %141 = vmatpush1.xpose.msra.mxu0 0.0
    %142 = vmatprep.subr.mxu0 0.0
    %143 = vmatpush1.xpose.msra.mxu0 0.0
    %144 = vmatprep.subr.mxu0 0.0
    %145 = vmatpush1.xpose.msra.mxu0 0.0
    %146 = vmatprep.subr.mxu0 0.0
    %147 = vmatpush1.xpose.msra.mxu0 0.0
    %148 = vmatprep.subr.mxu0 0.0
    %149 = vmatpush1.xpose.msra.mxu0 0.0
    %150 = vmatprep.mubr.f32.mxu0 %v44
    %151 = vmatmul.mubr.f32.gmra.mrb[0].mxu0 %v43
    %v152 = vpop.f32.mrb[0].mxu0
    %v153 = vadd.f32 %v84, %v152
    %v154 = vpop.f32.mrb[0].mxu0
    %155 = vmatprep.mubr.f32.mxu0 %v46
    %156 = vmatmul.mubr.f32.gmra.mrb[0].mxu0 %v45
    %v157 = vpop.f32.mrb[0].mxu0
    %v158 = vadd.f32 %v84, %v157
    %v159 = vpop.f32.mrb[0].mxu0
    %160 = vdwg.mxu0
    %161 = vst [vmem:[#allocation7] sm:$0xff] %v153
    %162 = vst [vmem:[#allocation7 + $0x8] sm:$0xff] %v158
    // Predicated region
    $region22: #{segment_consensus_forward.1} parent=1 // pred_check
      _
    $region23: #{segment_consensus_forward.1} parent=1 // pred_check_branch
      %164 = sbr.rel (0) target = $region25
    $region24: #{segment_consensus_forward.1} parent=1 // pred_region
      %s166 = ssub.s32 256, 256
      %167 = vsyncadd [#allocation4], %s166
      %s168 = sshll.u32 [#allocation7], 4
      %s169 = int_to_ptr.vmem [resolvable:$true] %s168
      %174 = dma.vmem_to_hbm [thread:$0]  %s169, 256, %s3, [#allocation4], 128, 128, 8
    $region25: #{segment_consensus_forward.1} parent=1 // pred_fallthru
      _
    // Predicated region
    $region26: #{segment_consensus_forward.1} parent=1 // pred_check
      _
    $region27: #{segment_consensus_forward.1} parent=1 // pred_check_branch
      %176 = sbr.rel (0) target = $region29
    $region28: #{segment_consensus_forward.1} parent=1 // pred_region
      %177 = dma.done [#allocation4], 256
    $region29: #{segment_consensus_forward.1} parent=1 // pred_fallthru
      _
    %178 = vsyncpa [#allocation3], 1
    %179 = vsyncpa [#allocation6], 1
    %180 = vsyncpa [#allocation4], 1

</llo_original>
